<compile_context>
chip_gen: v5e
topology: v5e:2x2
jax: 0.10.0
libtpu: 0.0.40
codegen_flags: <defaults>
</compile_context>

<pallas_src>
import math

import jax
import jax.numpy as jnp
from jax.experimental import pallas as pl
from jax.experimental.pallas import tpu as pltpu

LANE = 128
TM_MAX = 1024                      # max rows per tile (multiple of 8 sublanes)
TARGET_GRID_STEPS = 4              # keep >= 4 M-steps when possible (v7x megacore + pipelining)
TILE_VMEM_BUDGET = 24 * 1024 * 1024   # budget for tiles + resident weight (safe on v7x)
VMEM_LIMIT_BYTES = 32 * 1024 * 1024   # explicit scoped-VMEM limit (safe on v5e/v6e/v7x)
MIN_PALLAS_ELEMS = 1 << 14         # below this, XLA fusion beats kernel launch overhead


def _cdiv(a: int, b: int) -> int:
    return -(-a // b)


def _round_up(x: int, m: int) -> int:
    return (x + m - 1) // m * m


def linear_relu_kernel(x_ref, w_ref, b_ref, o_ref):
    # x_ref: [TM, F_in]    (streamed per grid step; ragged last block is fine,
    #                       garbage tail rows never reduce and OOB stores drop)
    # w_ref: [F_in, N_pad] (VMEM-resident across the whole grid)
    # b_ref: [1, N_pad]    (VMEM-resident)
    # o_ref: [TM, N_pad]   (lane-dense: N_pad % 128 == 0)
    y = jnp.dot(x_ref[...], w_ref[...], preferred_element_type=jnp.float32)
    y = y + b_ref[...]
    o_ref[...] = jnp.maximum(y, 0.0).astype(o_ref.dtype)


def prepare_params(weight, bias, dtype=None):
    """One-time parameter prep (keep OUT of the per-step hot path).

    weight: [F_out, F_in] (PyTorch convention), bias: [F_out]
    Returns (w_t [F_in, N_pad], b2d [1, N_pad], F_out) with N_pad a multiple of 128
    so the kernel's output lane dimension is dense. Padded columns are zero, so
    relu(x @ 0 + 0) = 0 and they are simply sliced away afterwards.
    Pass dtype=jnp.bfloat16 to halve weight/activation HBM traffic (accumulation
    stays f32 inside the kernel); default keeps the original dtype/numerics.
    """
    if dtype is not None:
        weight = weight.astype(dtype)
        bias = bias.astype(dtype)
    F_out, F_in = weight.shape
    n_pad = _round_up(max(F_out, LANE), LANE)
    w_t = jnp.zeros((F_in, n_pad), weight.dtype).at[:, :F_out].set(weight.T)
    b2d = jnp.zeros((1, n_pad), bias.dtype).at[0, :F_out].set(bias)
    return w_t, b2d, F_out


def _choose_tm(M, F_in, n_pad, itemsize):
    """Pick the M-tile size from the VMEM budget; None if the resident weight
    (plus double-buffering) does not fit."""
    # Pallas double-buffers every input; budget 2x for weight/bias too (conservative).
    resident = 2 * (F_in * n_pad + n_pad) * itemsize
    avail = TILE_VMEM_BUDGET - resident
    if avail <= 0:
        return None
    per_row = 2 * (F_in + n_pad) * itemsize          # double-buffered x tile + out tile
    tm_cap = (avail // per_row // 8) * 8
    if tm_cap < 8:
        return None
    # Keep at least TARGET_GRID_STEPS grid steps so megacore/pipelining have work.
    tm_target = _round_up(max(_cdiv(M, TARGET_GRID_STEPS), 8), 8)
    return max(8, min(TM_MAX, int(tm_cap), tm_target))


def _xla_linear_relu(x2d, w_t, b2d, f_out, B, S):
    y = jnp.maximum(x2d @ w_t + b2d, 0.0)
    return y[:, :f_out].reshape(B, S, f_out)


def linear_relu(x, w_t, b2d, f_out):
    """relu(x @ w_t + b), equivalent to the PyTorch Model.forward.

    x:   [B, S, F_in]
    w_t: [F_in, N_pad]  (from prepare_params)
    b2d: [1, N_pad]
    returns [B, S, f_out]
    """
    B, S, F_in = x.shape
    M = B * S
    n_pad = w_t.shape[1]
    x2d = x.reshape(M, F_in)
    if x2d.dtype != w_t.dtype:
        x2d = x2d.astype(w_t.dtype)      # optional bf16 path (see prepare_params)
    itemsize = jnp.dtype(x2d.dtype).itemsize

    # Tiny problem (e.g. the literal 1x2x2 module shape): a fused XLA op is
    # strictly faster than a Pallas custom call here.
    if M * F_in * n_pad < MIN_PALLAS_ELEMS:
        return _xla_linear_relu(x2d, w_t, b2d, f_out, B, S)

    tm = _choose_tm(M, F_in, n_pad, itemsize)
    if tm is None:
        # Resident weight does not fit the VMEM budget.
        # TODO(synk): N/K grid tiling with f32 VMEM accumulator for very large layers.
        return _xla_linear_relu(x2d, w_t, b2d, f_out, B, S)

    grid = (_cdiv(M, tm),)
    flops = 2 * M * F_in * n_pad
    bytes_accessed = (M * F_in + F_in * n_pad + n_pad + M * n_pad) * itemsize

    out2d = pl.pallas_call(
        linear_relu_kernel,
        out_shape=jax.ShapeDtypeStruct((M, n_pad), x2d.dtype),
        grid=grid,
        in_specs=[
            pl.BlockSpec((tm, F_in), lambda i: (i, 0)),      # streamed activations
            pl.BlockSpec((F_in, n_pad), lambda i: (0, 0)),   # resident weight
            pl.BlockSpec((1, n_pad), lambda i: (0, 0)),      # resident bias
        ],
        out_specs=pl.BlockSpec((tm, n_pad), lambda i: (i, 0)),
        compiler_params=pltpu.CompilerParams(
            dimension_semantics=("parallel",),               # split M across TCs (v7x)
            vmem_limit_bytes=VMEM_LIMIT_BYTES,
        ),
        cost_estimate=pl.CostEstimate(
            flops=flops, transcendentals=0, bytes_accessed=bytes_accessed
        ),
    )(x2d, w_t, b2d)

    if n_pad != f_out:
        out2d = out2d[:, :f_out]
    return out2d.reshape(B, S, f_out)


if __name__ == "__main__":
    key = jax.random.PRNGKey(0)
    k1, k2, k3, k4 = jax.random.split(key, 4)

    # --- Case 1: the literal module shape: x1 = randn(1, 2, 2), Linear(2, 2) ---
    B, S, F_in, F_out = 1, 2, 2, 2
    x_small = jax.random.normal(k1, (B, S, F_in), dtype=jnp.float32)
    bound = 1.0 / math.sqrt(F_in)   # PyTorch Linear default init range
    w_small = jax.random.uniform(k2, (F_out, F_in), minval=-bound, maxval=bound,
                                 dtype=jnp.float32)
    b_small = jax.random.uniform(k3, (F_out,), minval=-bound, maxval=bound,
                                 dtype=jnp.float32)

    wt_s, b2d_s, fo_s = prepare_params(w_small, b_small)
    out_small = linear_relu(x_small, wt_s, b2d_s, fo_s)   # dispatches to fused XLA
    jax.block_until_ready(out_small)
    ref_small = jnp.maximum(jnp.einsum("bsi,oi->bso", x_small, w_small) + b_small, 0.0)
    assert out_small.shape == (B, S, F_out)
    assert jnp.allclose(out_small, ref_small, atol=1e-5), "small-shape mismatch"

    # --- Case 2: a larger shape that actually exercises the Pallas kernel path ---
    # M = 2*250 = 500 is NOT a multiple of the tile -> exercises the ragged last block.
    B2, S2, F_in2, F_out2 = 2, 250, 128, 128
    kx, kw, kb = jax.random.split(k4, 3)
    x_big = jax.random.normal(kx, (B2, S2, F_in2), dtype=jnp.float32)
    bound2 = 1.0 / math.sqrt(F_in2)
    w_big = jax.random.uniform(kw, (F_out2, F_in2), minval=-bound2, maxval=bound2,
                               dtype=jnp.float32)
    b_big = jax.random.uniform(kb, (F_out2,), minval=-bound2, maxval=bound2,
                               dtype=jnp.float32)

    wt_b, b2d_b, fo_b = prepare_params(w_big, b_big)
    out_big = linear_relu(x_big, wt_b, b2d_b, fo_b)        # Pallas path, >=4 grid steps
    jax.block_until_ready(out_big)
    ref_big = jnp.maximum(jnp.einsum("bsi,oi->bso", x_big, w_big) + b_big, 0.0)
    assert out_big.shape == (B2, S2, F_out2)
    assert jnp.allclose(out_big, ref_big, atol=1e-4), "big-shape mismatch"

    print("KERNEL_OK")
</pallas_src>

<mosaic_0001>
module attributes {stable_mosaic.version = 11 : i64} {
  func.func @linear_relu_kernel(%arg0: i32, %arg1: memref<128x128xf32, #tpu.memory_space<vmem>>, %arg2: memref<128x128xf32, #tpu.memory_space<vmem>>, %arg3: memref<1x128xf32, #tpu.memory_space<vmem>>, %arg4: memref<128x128xf32, #tpu.memory_space<vmem>>) attributes {dimension_semantics = [#tpu.dimension_semantics<parallel>], iteration_bounds = array<i64: 4>, scalar_prefetch = 0 : i64, scratch_operands = 0 : i64, tpu.core_type = #tpu.core_type<tc>, window_params = [{transform_indices = @transform_0, window_bounds = array<i64: 128, 128>}, {pipeline_mode = #tpu.pipeline_mode<synchronous>, transform_indices = @transform_1, window_bounds = array<i64: 128, 128>}, {pipeline_mode = #tpu.pipeline_mode<synchronous>, transform_indices = @transform_2, window_bounds = array<i64: 1, 128>}, {transform_indices = @transform_3, window_bounds = array<i64: 128, 128>}]} {
    %c0 = arith.constant 0 : index
    %c0_0 = arith.constant 0 : index
    %0 = vector.load %arg1[%c0, %c0_0] : memref<128x128xf32, #tpu.memory_space<vmem>>, vector<128x128xf32>
    %c0_1 = arith.constant 0 : index
    %c0_2 = arith.constant 0 : index
    %1 = vector.load %arg2[%c0_1, %c0_2] : memref<128x128xf32, #tpu.memory_space<vmem>>, vector<128x128xf32>
    %cst = arith.constant dense<0.000000e+00> : vector<128x128xf32>
    %2 = tpu.matmul %0, %1, %cst {dimension_numbers = #tpu.dot_dimension_numbers<[1], [0], [0], [1], [0, 0, 1, 1], [], []>} : vector<128x128xf32>, vector<128x128xf32>, vector<128x128xf32> -> vector<128x128xf32>
    %c0_3 = arith.constant 0 : index
    %c0_4 = arith.constant 0 : index
    %3 = vector.load %arg3[%c0_3, %c0_4] : memref<1x128xf32, #tpu.memory_space<vmem>>, vector<1x128xf32>
    %4 = vector.broadcast %3 : vector<1x128xf32> to vector<128x128xf32>
    %5 = arith.addf %2, %4 : vector<128x128xf32>
    %cst_5 = arith.constant 0.000000e+00 : f32
    %6 = vector.broadcast %cst_5 : f32 to vector<128x128xf32>
    %7 = arith.maximumf %5, %6 : vector<128x128xf32>
    %c0_6 = arith.constant 0 : index
    %c0_7 = arith.constant 0 : index
    %8 = vector.load %arg4[%c0_6, %c0_7] : memref<128x128xf32, #tpu.memory_space<vmem>>, vector<128x128xf32>
    tpu.vector_store %arg4[%c0_6, %c0_7], %7 {strides = array<i32>} : memref<128x128xf32, #tpu.memory_space<vmem>>, vector<128x128xf32>,
    return
  }
  func.func @transform_0(%arg0: i32) -> (i32, i32) {
    %c0_i32 = arith.constant 0 : i32
    %c0_i32_0 = arith.constant 0 : i32
    return %arg0, %c0_i32 : i32, i32
  }
  func.func @transform_1(%arg0: i32) -> (i32, i32) {
    %c0_i32 = arith.constant 0 : i32
    %c0_i32_0 = arith.constant 0 : i32
    %c0_i32_1 = arith.constant 0 : i32
    return %c0_i32, %c0_i32_0 : i32, i32
  }
  func.func @transform_2(%arg0: i32) -> (i32, i32) {
    %c0_i32 = arith.constant 0 : i32
    %c0_i32_0 = arith.constant 0 : i32
    %c0_i32_1 = arith.constant 0 : i32
    return %c0_i32, %c0_i32_0 : i32, i32
  }
  func.func @transform_3(%arg0: i32) -> (i32, i32) {
    %c0_i32 = arith.constant 0 : i32
    %c0_i32_0 = arith.constant 0 : i32
    return %arg0, %c0_i32 : i32, i32
  }
}

</mosaic_0001>

<llo_original>
// kernel: tpu_custom_call.1
$region0: #{tpu_custom_call.1}
  #allocation0 [shape = 'u32[]', space=smem, size = 0x4, offset = 0x4, fixed_abs, tag = 'smem constant byte address 0x4 - core index']
  #allocation1 [shape = 'u32[72,128]{1,0:T(1,128)}', space=vmem, size = 0x9000, scoped, tag = 'internal scratch']
  %s0 = inlined_call_operand.hbm [shape: f32[500,128], index: 0, kind: input, shape index: {}]
  %s1 = inlined_call_operand.hbm [shape: f32[128,128], index: 1, kind: input, shape index: {}]
  %s2 = inlined_call_operand.vmem [shape: f32[1,128], index: 2, kind: input, shape index: {}]
  %s3 = inlined_call_operand.hbm [shape: f32[500,128], index: 3, kind: output, shape index: {}]
  %s4 = sld [smem:[#allocation0]]
  $region53: #{tpu_custom_call.1} parent=0
    _
  %s6 = ssub.s32 1, %s4
  %s7 = scalar_select 0, %s6, %s4
  $region1: #{tpu_custom_call.1} parent=0
    #allocation2 [shape = 'u8[131072]{0}', space=vmem, size = 0x20000, scoped, tag = 'input window, operand 0']
    #allocation3 [shape = 's32[2]{0}', space=sflag, size = 0x8, scoped, tag = 'scoped memory for tpu_custom_call.1']
    #allocation4 [shape = 's32[2]{0}', space=sflag, size = 0x8, scoped, tag = 'scoped memory for tpu_custom_call.1']
    #allocation5 [shape = 'u8[65536]{0}', space=vmem, size = 0x10000, scoped, tag = 'input window, operand 1, single buffered']
    #allocation6 [shape = 's32[1]{0}', space=sflag, size = 0x4, scoped, tag = 'scoped memory for tpu_custom_call.1']
    #allocation7 [shape = 'u8[131072]{0}', space=vmem, size = 0x20000, scoped, tag = 'output window, operand 0']
    %8 = vsyncpa [#allocation3], 0
    %s9 = scalar_lea.sflag [#allocation3], 1
    %10 = vsyncpa %s9, 0
    %11 = vsyncpa [#allocation6], 0
    %12 = vsyncpa [#allocation4], 0
    %s13 = scalar_lea.sflag [#allocation4], 1
    %14 = vsyncpa %s13, 0
    loop: start=0, step=1, limit=6
    $region2: #{tpu_custom_call.1} parent=1 // loop_pre_header
      _
    $region3: #{tpu_custom_call.1} parent=1 // loop_header
      %s16 = sphi 0, %s20
      %p17 = scmp.ge.s32.totalorder %s16, 6
      %s26 = sphi 0, %s28
      %s29 = sphi 0, %s26
      %s30 = sphi 0, %s29
      %s46 = sphi 0, %s30
      %s50 = sphi 0, %s50
      %s52 = sphi 0, %s50
      %s53 = sphi 0, %s52
      %s67 = sphi 0, %s53
      %s71 = sphi 0, %s71
      %s73 = sphi 0, %s71
      %s74 = sphi 0, %s73
      %s88 = sphi 0, %s74
      %s94 = sphi 0, %s96
      %s97 = sphi 0, %s94
      %s98 = sphi 0, %s97
      %s114 = sphi 0, %s98
    $region4: #{tpu_custom_call.1} parent=1 // loop_header_branch
      %19 = sbr.rel (%p17) target = $region8
    $region5: #{tpu_custom_call.1} parent=1 // loop_body
      %s21 = ssub.s32 %s16, 1
      %s22 = ssub.s32 %s16, 2
      %s23 = sadd.s32 %s16, 1
      %s24 = ssub.s32 %s16, %s23
      %p25 = scmp.eq.s32.totalorder %s24, 0
      %s27 = sadd.s32 %s26, 1
      %s28 = scalar_select %p25, %s26, %s27
      %p31 = pneg %p25
      %p32 = scmp.eq.s32.totalorder %s16, 3
      %p33 = por %p31, %p32
      %p34 = scmp.ne.s32.totalorder %s26, %s29
      %p35 = scmp.eq.s32.totalorder %s16, 0
      %p36 = por %p34, %p35
      %p37 = scmp.ne.s32.totalorder %s26, %s29
      %p38 = scmp.eq.s32.totalorder %s21, 3
      %p39 = por %p37, %p38
      %p40 = scmp.ne.s32.totalorder %s29, %s30
      %p41 = scmp.eq.s32.totalorder %s21, 0
      %p42 = por %p40, %p41
      %p43 = scmp.ne.s32.totalorder %s29, %s30
      %p44 = scmp.eq.s32.totalorder %s22, 3
      %p45 = por %p43, %p44
      %p47 = scmp.ne.s32.totalorder %s30, %s46
      %p48 = scmp.eq.s32.totalorder %s22, 0
      %p49 = por %p47, %p48
      %s51 = sadd.s32 %s50, 1
      %p54 = scmp.eq.s32.totalorder %s16, 3
      %p55 = scmp.ne.s32.totalorder %s50, %s52
      %p56 = scmp.eq.s32.totalorder %s16, 0
      %p57 = por %p55, %p56
      %p58 = scmp.ne.s32.totalorder %s50, %s52
      %p59 = scmp.eq.s32.totalorder %s21, 3
      %p60 = por %p58, %p59
      %p61 = scmp.ne.s32.totalorder %s52, %s53
      %p62 = scmp.eq.s32.totalorder %s21, 0
      %p63 = por %p61, %p62
      %p64 = scmp.ne.s32.totalorder %s52, %s53
      %p65 = scmp.eq.s32.totalorder %s22, 3
      %p66 = por %p64, %p65
      %p68 = scmp.ne.s32.totalorder %s53, %s67
      %p69 = scmp.eq.s32.totalorder %s22, 0
      %p70 = por %p68, %p69
      %s72 = sadd.s32 %s71, 1
      %p75 = scmp.eq.s32.totalorder %s16, 3
      %p76 = scmp.ne.s32.totalorder %s71, %s73
      %p77 = scmp.eq.s32.totalorder %s16, 0
      %p78 = por %p76, %p77
      %p79 = scmp.ne.s32.totalorder %s71, %s73
      %p80 = scmp.eq.s32.totalorder %s21, 3
      %p81 = por %p79, %p80
      %p82 = scmp.ne.s32.totalorder %s73, %s74
      %p83 = scmp.eq.s32.totalorder %s21, 0
      %p84 = por %p82, %p83
      %p85 = scmp.ne.s32.totalorder %s73, %s74
      %p86 = scmp.eq.s32.totalorder %s22, 3
      %p87 = por %p85, %p86
      %p89 = scmp.ne.s32.totalorder %s74, %s88
      %p90 = scmp.eq.s32.totalorder %s22, 0
      %p91 = por %p89, %p90
      %s92 = ssub.s32 %s16, %s23
      %p93 = scmp.eq.s32.totalorder %s92, 0
      %s95 = sadd.s32 %s94, 1
      %s96 = scalar_select %p93, %s94, %s95
      %p99 = pneg %p93
      %p100 = scmp.eq.s32.totalorder %s16, 3
      %p101 = por %p99, %p100
      %p102 = scmp.ne.s32.totalorder %s94, %s97
      %p103 = scmp.eq.s32.totalorder %s16, 0
      %p104 = por %p102, %p103
      %p105 = scmp.ne.s32.totalorder %s94, %s97
      %p106 = scmp.eq.s32.totalorder %s21, 3
      %p107 = por %p105, %p106
      %p108 = scmp.ne.s32.totalorder %s97, %s98
      %p109 = scmp.eq.s32.totalorder %s21, 0
      %p110 = por %p108, %p109
      %p111 = scmp.ne.s32.totalorder %s97, %s98
      %p112 = scmp.eq.s32.totalorder %s22, 3
      %p113 = por %p111, %p112
      %p115 = scmp.ne.s32.totalorder %s98, %s114
      %p116 = scmp.eq.s32.totalorder %s22, 0
      %p117 = por %p115, %p116
      %p118 = scmp.le.s32.totalorder 1, %s16
      %p119 = scmp.lt.s32.totalorder %s16, 5
      %p120 = pnand %p118, %p119
      %p121 = pneg %p120
      // Predicated region
      $region9: #{tpu_custom_call.1} parent=5 // pred_check
        _
      $region10: #{tpu_custom_call.1} parent=5 // pred_check_branch
        %123 = sbr.rel (%p120) target = $region12
      $region11: #{tpu_custom_call.1} parent=5 // pred_region
        %s124 = ssub.s32 %s16, 1
        // Predicated region
        $region13: #{tpu_custom_call.1} parent=11 // pred_check
          %p125 = pneg %p63
        $region14: #{tpu_custom_call.1} parent=11 // pred_check_branch
          %127 = sbr.rel (%p125) target = $region16
        $region15: #{tpu_custom_call.1} parent=11 // pred_region
          %129 = vsyncadd [#allocation6], 0
          %s130 = sshll.u32 %s1, 4
          %s131 = int_to_ptr.hbm [resolvable:$true] %s130
          %s132 = sshll.u32 [#allocation5], 4
          %s133 = int_to_ptr.vmem [resolvable:$true] %s132
          %138 = dma.hbm_to_vmem [thread:$0]  %s131, 2048, %s133, [#allocation6], 128, 128, 8
        $region16: #{tpu_custom_call.1} parent=11 // pred_fallthru
          _
        // Predicated region
        $region17: #{tpu_custom_call.1} parent=11 // pred_check
          %p139 = pneg %p84
        $region18: #{tpu_custom_call.1} parent=11 // pred_check_branch
          %141 = sbr.rel (%p139) target = $region20
        $region19: #{tpu_custom_call.1} parent=11 // pred_region
          _
        $region20: #{tpu_custom_call.1} parent=11 // pred_fallthru
          _
      $region12: #{tpu_custom_call.1} parent=5 // pred_fallthru
        _
      %p142 = scmp.lt.s32.totalorder %s16, 4
      // Predicated region
      $region21: #{tpu_custom_call.1} parent=5 // pred_check
        %p143 = pneg %p142
      $region22: #{tpu_custom_call.1} parent=5 // pred_check_branch
        %145 = sbr.rel (%p143) target = $region24
      $region23: #{tpu_custom_call.1} parent=5 // pred_region
        // Predicated region
        $region25: #{tpu_custom_call.1} parent=23 // pred_check
          %p146 = pneg %p36
        $region26: #{tpu_custom_call.1} parent=23 // pred_check_branch
          %148 = sbr.rel (%p146) target = $region28
        $region27: #{tpu_custom_call.1} parent=23 // pred_region
          %s149 = sand.u32 %s26, 1
          %s150 = scalar_lea.sflag [#allocation3], %s149
          %s151 = sand.u32 %s26, 1
          %s152 = smul.addr %s151, 128
          %s153 = scalar_lea.vmem [#allocation2], %s152
          %s154 = smul.u32 16, %s16
          %s155 = ssub.s32 63, %s154
          %p156 = scmp.lt.s32.totalorder %s155, 16
          %s157 = scalar_select %p156, %s155, 16
          %s158 = smul.u32 8, %s157
          %s159 = ssub.s32 128, %s158
          %s160 = sshll.u32 %s159, 4
          %161 = vsyncadd %s150, %s160
          %p162 = scmp.ne.s32.totalorder 0, %s158
          %s163 = smul.addr %s154, 8
          %s164 = scalar_lea.hbm %s0, %s163
          %s165 = smul.u32 8, %s157
          %s166 = sshll.u32 %s164, 4
          %s167 = int_to_ptr.hbm [resolvable:$true] %s166
          %s168 = sshll.u32 %s153, 4
          %s169 = int_to_ptr.vmem [resolvable:$true] %s168
          %s170 = sshll.u32 %s165, 4
          %174 = dma.hbm_to_vmem [thread:$0]  (%p162), %s167, %s170, %s169, %s150, 128, 128, 8
        $region28: #{tpu_custom_call.1} parent=23 // pred_fallthru
          _
      $region24: #{tpu_custom_call.1} parent=5 // pred_fallthru
        _
      %p175 = scmp.le.s32.totalorder 1, %s16
      %p176 = scmp.lt.s32.totalorder %s16, 5
      %p177 = pnand %p175, %p176
      %p178 = pneg %p177
      // Predicated region
      $region29: #{tpu_custom_call.1} parent=5 // pred_check
        _
      $region30: #{tpu_custom_call.1} parent=5 // pred_check_branch
        %180 = sbr.rel (%p177) target = $region32
      $region31: #{tpu_custom_call.1} parent=5 // pred_region
        %s181 = ssub.s32 %s16, 1
        %s182 = sand.u32 %s29, 1
        %s183 = scalar_lea.sflag [#allocation3], %s182
        %s184 = sand.u32 %s29, 1
        %s185 = smul.addr %s184, 128
        %s186 = scalar_lea.vmem [#allocation2], %s185
        // Predicated region
        $region33: #{tpu_custom_call.1} parent=31 // pred_check
          %p187 = pneg %p42
        $region34: #{tpu_custom_call.1} parent=31 // pred_check_branch
          %189 = sbr.rel (%p187) target = $region36
        $region35: #{tpu_custom_call.1} parent=31 // pred_region
          %191 = dma.done %s183, 2048
        $region36: #{tpu_custom_call.1} parent=31 // pred_fallthru
          _
        // Predicated region
        $region37: #{tpu_custom_call.1} parent=31 // pred_check
          %p192 = pneg %p63
        $region38: #{tpu_custom_call.1} parent=31 // pred_check_branch
          %194 = sbr.rel (%p192) target = $region40
        $region39: #{tpu_custom_call.1} parent=31 // pred_region
          %196 = dma.done [#allocation6], 2048
        $region40: #{tpu_custom_call.1} parent=31 // pred_fallthru
          _
        %s197 = sand.u32 %s29, 1
        %s198 = scalar_lea.sflag [#allocation3], %s197
        %s199 = sand.u32 %s29, 1
        %s200 = smul.addr %s199, 128
        %s201 = scalar_lea.vmem [#allocation2], %s200
        %p202 = pneg %p42
        %p203 = pneg %p39
        %p204 = pneg %p63
        %p205 = pneg %p60
        %p206 = pneg %p84
        %p207 = pneg %p81
        %p208 = pneg %p110
        %p209 = pneg %p107
        %s210 = sand.u32 %s97, 1
        %s211 = scalar_lea.sflag [#allocation4], %s210
        %s212 = sand.u32 %s97, 1
        %s213 = smul.addr %s212, 128
        %s214 = scalar_lea.vmem [#allocation7], %s213
        %s215 = smul.u32 16, %s21
        %s216 = ssub.s32 63, %s215
        %p217 = scmp.lt.s32.totalorder %s216, 16
        %s218 = scalar_select %p217, %s216, 16
        %s219 = smul.u32 8, %s218
        %s220 = smul.u32 16, %s21
        %s221 = ssub.s32 63, %s220
        %p222 = scmp.lt.s32.totalorder %s221, 16
        %s223 = scalar_select %p222, %s221, 16
        %s224 = smul.u32 8, %s223
        %v225 = vld [vmem:[%s186] sm:$0xff]
        %v226 = vld [vmem:[%s186 + $0x8] sm:$0xff]
        %v227 = vld [vmem:[%s186 + $0x10] sm:$0xff]
        %v228 = vld [vmem:[%s186 + $0x18] sm:$0xff]
        %v229 = vld [vmem:[%s186 + $0x20] sm:$0xff]
        %v230 = vld [vmem:[%s186 + $0x28] sm:$0xff]
        %v231 = vld [vmem:[%s186 + $0x30] sm:$0xff]
        %v232 = vld [vmem:[%s186 + $0x38] sm:$0xff]
        %v233 = vld [vmem:[%s186 + $0x40] sm:$0xff]
        %v234 = vld [vmem:[%s186 + $0x48] sm:$0xff]
        %v235 = vld [vmem:[%s186 + $0x50] sm:$0xff]
        %v236 = vld [vmem:[%s186 + $0x58] sm:$0xff]
        %v237 = vld [vmem:[%s186 + $0x60] sm:$0xff]
        %v238 = vld [vmem:[%s186 + $0x68] sm:$0xff]
        %v239 = vld [vmem:[%s186 + $0x70] sm:$0xff]
        %v240 = vld [vmem:[%s186 + $0x78] sm:$0xff]
        %v241 = vld [vmem:[#allocation5] sm:$0xff]
        %v242 = vld [vmem:[#allocation5 + $0x8] sm:$0xff]
        %v243 = vld [vmem:[#allocation5 + $0x10] sm:$0xff]
        %v244 = vld [vmem:[#allocation5 + $0x18] sm:$0xff]
        %v245 = vld [vmem:[#allocation5 + $0x20] sm:$0xff]
        %v246 = vld [vmem:[#allocation5 + $0x28] sm:$0xff]
        %v247 = vld [vmem:[#allocation5 + $0x30] sm:$0xff]
        %v248 = vld [vmem:[#allocation5 + $0x38] sm:$0xff]
        %v249 = vld [vmem:[#allocation5 + $0x40] sm:$0xff]
        %v250 = vld [vmem:[#allocation5 + $0x48] sm:$0xff]
        %v251 = vld [vmem:[#allocation5 + $0x50] sm:$0xff]
        %v252 = vld [vmem:[#allocation5 + $0x58] sm:$0xff]
        %v253 = vld [vmem:[#allocation5 + $0x60] sm:$0xff]
        %v254 = vld [vmem:[#allocation5 + $0x68] sm:$0xff]
        %v255 = vld [vmem:[#allocation5 + $0x70] sm:$0xff]
        %v256 = vld [vmem:[#allocation5 + $0x78] sm:$0xff]
        %v257 = vld [vmem:[%s2] sm:$0x1]
        %v259 = vperm.slane %v257, 0
        %261 = vmatpush.msra.mxu0 %v256
        %262 = vmatpush.msra.mxu0 %v255
        %263 = vmatpush.msra.mxu0 %v254
        %264 = vmatpush.msra.mxu0 %v253
        %265 = vmatpush.msra.mxu0 %v252
        %266 = vmatpush.msra.mxu0 %v251
        %267 = vmatpush.msra.mxu0 %v250
        %268 = vmatpush.msra.mxu0 %v249
        %269 = vmatpush.msra.mxu0 %v248
        %270 = vmatpush.msra.mxu0 %v247
        %271 = vmatpush.msra.mxu0 %v246
        %272 = vmatpush.msra.mxu0 %v245
        %273 = vmatpush.msra.mxu0 %v244
        %274 = vmatpush.msra.mxu0 %v243
        %275 = vmatpush.msra.mxu0 %v242
        %276 = vmatpush.msra.mxu0 %v241
        %277 = vmatmul.f32.gmra.mxu0 %v225
        %v278 = vpop.f32.mrf.mxu0
        %v279 = vadd.f32 %v259, %v278
        %280 = vmatmul.f32.gmra.mxu0 %v226
        %v281 = vpop.f32.mrf.mxu0
        %v282 = vadd.f32 %v259, %v281
        %283 = vmatmul.f32.gmra.mxu0 %v227
        %v284 = vpop.f32.mrf.mxu0
        %v285 = vadd.f32 %v259, %v284
        %286 = vmatmul.f32.gmra.mxu0 %v228
        %v287 = vpop.f32.mrf.mxu0
        %v288 = vadd.f32 %v259, %v287
        %289 = vmatmul.f32.gmra.mxu0 %v229
        %v290 = vpop.f32.mrf.mxu0
        %v291 = vadd.f32 %v259, %v290
        %292 = vmatmul.f32.gmra.mxu0 %v230
        %v293 = vpop.f32.mrf.mxu0
        %v294 = vadd.f32 %v259, %v293
        %295 = vmatmul.f32.gmra.mxu0 %v231
        %v296 = vpop.f32.mrf.mxu0
        %v297 = vadd.f32 %v259, %v296
        %298 = vmatmul.f32.gmra.mxu0 %v232
        %v299 = vpop.f32.mrf.mxu0
        %v300 = vadd.f32 %v259, %v299
        %301 = vmatmul.f32.gmra.mxu0 %v233
        %v302 = vpop.f32.mrf.mxu0
        %v303 = vadd.f32 %v259, %v302
        %304 = vmatmul.f32.gmra.mxu0 %v234
        %v305 = vpop.f32.mrf.mxu0
        %v306 = vadd.f32 %v259, %v305
        %307 = vmatmul.f32.gmra.mxu0 %v235
        %v308 = vpop.f32.mrf.mxu0
        %v309 = vadd.f32 %v259, %v308
        %310 = vmatmul.f32.gmra.mxu0 %v236
        %v311 = vpop.f32.mrf.mxu0
        %v312 = vadd.f32 %v259, %v311
        %313 = vmatmul.f32.gmra.mxu0 %v237
        %v314 = vpop.f32.mrf.mxu0
        %v315 = vadd.f32 %v259, %v314
        %316 = vmatmul.f32.gmra.mxu0 %v238
        %v317 = vpop.f32.mrf.mxu0
        %v318 = vadd.f32 %v259, %v317
        %319 = vmatmul.f32.gmra.mxu0 %v239
        %v320 = vpop.f32.mrf.mxu0
        %v321 = vadd.f32 %v259, %v320
        %322 = vmatmul.f32.gmra.mxu0 %v240
        %v323 = vpop.f32.mrf.mxu0
        %v324 = vadd.f32 %v259, %v323
        %325 = vdwg.mxu0
        %v326 = vmax.f32 %v279, 0.0
        %v327 = vmax.f32 %v282, 0.0
        %v328 = vmax.f32 %v285, 0.0
        %v329 = vmax.f32 %v288, 0.0
        %v330 = vmax.f32 %v291, 0.0
        %v331 = vmax.f32 %v294, 0.0
        %v332 = vmax.f32 %v297, 0.0
        %v333 = vmax.f32 %v300, 0.0
        %v334 = vmax.f32 %v303, 0.0
        %v335 = vmax.f32 %v306, 0.0
        %v336 = vmax.f32 %v309, 0.0
        %v337 = vmax.f32 %v312, 0.0
        %v338 = vmax.f32 %v315, 0.0
        %v339 = vmax.f32 %v318, 0.0
        %v340 = vmax.f32 %v321, 0.0
        %v341 = vmax.f32 %v324, 0.0
        %342 = vst [vmem:[%s214] sm:$0xff] %v326
        %343 = vst [vmem:[%s214 + $0x8] sm:$0xff] %v327
        %344 = vst [vmem:[%s214 + $0x10] sm:$0xff] %v328
        %345 = vst [vmem:[%s214 + $0x18] sm:$0xff] %v329
        %346 = vst [vmem:[%s214 + $0x20] sm:$0xff] %v330
        %347 = vst [vmem:[%s214 + $0x28] sm:$0xff] %v331
        %348 = vst [vmem:[%s214 + $0x30] sm:$0xff] %v332
        %349 = vst [vmem:[%s214 + $0x38] sm:$0xff] %v333
        %350 = vst [vmem:[%s214 + $0x40] sm:$0xff] %v334
        %351 = vst [vmem:[%s214 + $0x48] sm:$0xff] %v335
        %352 = vst [vmem:[%s214 + $0x50] sm:$0xff] %v336
        %353 = vst [vmem:[%s214 + $0x58] sm:$0xff] %v337
        %354 = vst [vmem:[%s214 + $0x60] sm:$0xff] %v338
        %355 = vst [vmem:[%s214 + $0x68] sm:$0xff] %v339
        %356 = vst [vmem:[%s214 + $0x70] sm:$0xff] %v340
        %357 = vst [vmem:[%s214 + $0x78] sm:$0xff] %v341
        %s358 = sand.u32 %s97, 1
        %s359 = scalar_lea.sflag [#allocation4], %s358
        %s360 = sand.u32 %s97, 1
        %s361 = smul.addr %s360, 128
        %s362 = scalar_lea.vmem [#allocation7], %s361
        // Predicated region
        $region41: #{tpu_custom_call.1} parent=31 // pred_check
          %p363 = pneg %p107
        $region42: #{tpu_custom_call.1} parent=31 // pred_check_branch
          %365 = sbr.rel (%p363) target = $region44
        $region43: #{tpu_custom_call.1} parent=31 // pred_region
          %s366 = smul.u32 16, %s21
          %s367 = ssub.s32 63, %s366
          %p368 = scmp.lt.s32.totalorder %s367, 16
          %s369 = scalar_select %p368, %s367, 16
          %s370 = smul.u32 8, %s369
          %s371 = ssub.s32 128, %s370
          %s372 = sshll.u32 %s371, 4
          %373 = vsyncadd %s359, %s372
          %p374 = scmp.ne.s32.totalorder 0, %s370
          %s375 = smul.addr %s366, 8
          %s376 = scalar_lea.hbm %s3, %s375
          %s377 = smul.u32 8, %s369
          %s378 = sshll.u32 %s362, 4
          %s379 = int_to_ptr.vmem [resolvable:$true] %s378
          %s380 = sshll.u32 %s376, 4
          %s381 = int_to_ptr.hbm [resolvable:$true] %s380
          %s382 = sshll.u32 %s377, 4
          %386 = dma.vmem_to_hbm [thread:$0]  (%p374), %s379, %s382, %s381, %s359, 128, 128, 8
        $region44: #{tpu_custom_call.1} parent=31 // pred_fallthru
          _
      $region32: #{tpu_custom_call.1} parent=5 // pred_fallthru
        _
      %p387 = scmp.le.s32.totalorder 2, %s16
      // Predicated region
      $region45: #{tpu_custom_call.1} parent=5 // pred_check
        %p388 = pneg %p387
      $region46: #{tpu_custom_call.1} parent=5 // pred_check_branch
        %390 = sbr.rel (%p388) target = $region48
      $region47: #{tpu_custom_call.1} parent=5 // pred_region
        %s391 = ssub.s32 %s16, 2
        // Predicated region
        $region49: #{tpu_custom_call.1} parent=47 // pred_check
          %p392 = pneg %p113
        $region50: #{tpu_custom_call.1} parent=47 // pred_check_branch
          %394 = sbr.rel (%p392) target = $region52
        $region51: #{tpu_custom_call.1} parent=47 // pred_region
          %s395 = sand.u32 %s98, 1
          %s396 = scalar_lea.sflag [#allocation4], %s395
          %s397 = sand.u32 %s98, 1
          %s398 = smul.addr %s397, 128
          %s399 = scalar_lea.vmem [#allocation7], %s398
          %401 = dma.done %s396, 2048
        $region52: #{tpu_custom_call.1} parent=47 // pred_fallthru
          _
      $region48: #{tpu_custom_call.1} parent=5 // pred_fallthru
        _
    $region6: #{tpu_custom_call.1} parent=1 // loop_footer
      %s20 = sadd.s32 1, %s16
    $region7: #{tpu_custom_call.1} parent=1 // loop_footer_branch
      %15 = sbr.rel target = $region3
    $region8: #{tpu_custom_call.1} parent=1 // loop_exit
      _
    %402 = vsyncpa [#allocation3], 1
    %s403 = scalar_lea.sflag [#allocation3], 1
    %404 = vsyncpa %s403, 1
    %405 = vsyncpa [#allocation6], 1
    %406 = vsyncpa [#allocation4], 1
    %s407 = scalar_lea.sflag [#allocation4], 1
    %408 = vsyncpa %s407, 1

</llo_original>
